<compile_context>
chip_gen: v5e
topology: v5e:2x2
jax: 0.10.0
libtpu: 0.0.40
codegen_flags: <defaults>
</compile_context>

<pallas_src>
import functools

import jax
import jax.numpy as jnp
from jax import lax
from jax.experimental import pallas as pl
from jax.experimental.pallas import tpu as pltpu


def _kld_tile_kernel(x_ref, out_ref, *, n_heads, bt, total_b, offset1, offset2):
    """x_ref: [N, bt, C] block (native dtype); out_ref: [1, 1, C] f32 tile partial."""
    c = x_ref.shape[-1]
    neg = jnp.float32(-1e30)  # finite "-inf": exp() underflows to exactly 0 in f32

    # Static lane mask over classes: only [offset1, offset2) participates in the
    # softmaxes.  No lane-offset slice -> no relayout pass over the whole slab.
    lane_ids = lax.broadcasted_iota(jnp.int32, (bt, c), 1)
    lane_mask = (lane_ids >= offset1) & (lane_ids < offset2)

    # Head-accumulation loop: one head at a time; only three [bt, C] f32
    # accumulators stay live across heads, so vreg/VMEM pressure stays bounded.
    ent = jnp.zeros((bt, c), jnp.float32)    # sum_n q_n * logp_n
    qsum = jnp.zeros((bt, c), jnp.float32)   # sum_n q_n
    lsum = jnp.zeros((bt, c), jnp.float32)   # sum_n logp_n
    for k in range(n_heads):                 # static, small head count
        xk = x_ref[k].astype(jnp.float32)    # [bt, C] upcast on the VMEM tile
        xk = jnp.where(lane_mask, xk, neg)   # out-of-range classes -> exp == 0
        m = jnp.max(xk, axis=-1, keepdims=True)
        z = xk - m
        e = jnp.exp(z)
        s = jnp.sum(e, axis=-1, keepdims=True)
        logp = z - jnp.log(s)                # log_softmax over the class window
        q = e / s                            # exact softmax (EUP/VPU has slack)
        ent = ent + q * logp
        qsum = qsum + q
        lsum = lsum + logp

    # sum_{k != l} q_l*(logq_l - logp_k) per (b, d); diagonal cancels exactly
    # because logq and logp come from the identical per-head formula.
    contrib = jnp.float32(n_heads) * ent - qsum * lsum   # [bt, C]

    # Zero padded batch rows (edge tile of the grid) and out-of-range class lanes.
    b_start = pl.program_id(0) * bt
    row_ids = lax.broadcasted_iota(jnp.int32, (bt, 1), 0) + b_start
    row_mask = row_ids < total_b
    contrib = jnp.where(row_mask & lane_mask, contrib, 0.0)

    # Per-tile lane partial: heads + batch rows reduced in-kernel, classes stay on
    # lanes (masked lanes are exactly 0); the tiny cross-tile sum happens in glue.
    out_ref[...] = jnp.sum(contrib, axis=0, keepdims=True).reshape(1, 1, c)


def _vmem_capacity_bytes():
    """Physical VMEM per core (v5e/v6e: 128 MiB, v7x: 64 MiB); safe fallback."""
    try:
        info_fn = getattr(pltpu, "get_tpu_info", None)
        if info_fn is not None:
            cap = int(info_fn().vmem_capacity_bytes)
            if cap > 0:
                return cap
    except Exception:
        pass
    return 64 * 1024 * 1024  # conservative (v7x per-TC size)


def _choose_batch_tile(n, b, c, dtype, vmem_cap, cap=1024):
    """Batch-tile size sized from physical VMEM (generation-aware).

    Per batch row: 2 double-buffered native-width input copies of all heads/classes
    plus ~5 live f32 slabs inside the head loop and 3 f32 accumulators (~8*C f32).
    Budget is ~60% of physical VMEM, capped at 64 MiB (v6e sweet spot, v7x-safe)."""
    itemsize = jnp.dtype(dtype).itemsize
    budget = min(int(vmem_cap * 0.6), 64 * 1024 * 1024)
    per_row = 2 * n * c * itemsize + 8 * c * 4
    bt = budget // max(per_row, 1)
    bt = min(bt, cap, b)
    if bt >= b:
        return b                            # single tile covers the whole batch
    pack = max(8, 32 // itemsize)           # sublane packing: 8 f32 / 16 bf16 / 32 i8
    return max(pack, (bt // pack) * pack)


def kld_pallas(x_stack, offset1: int, offset2: int, block_b=None):
    """x_stack: [N, B, C] logits (any float dtype); offsets are static Python ints."""
    n, b, c = x_stack.shape
    d = offset2 - offset1
    assert 0 <= offset1 and 0 < d and offset2 <= c

    vmem_cap = _vmem_capacity_bytes()
    bt = block_b if block_b is not None else _choose_batch_tile(n, b, c, x_stack.dtype, vmem_cap)
    bt = max(1, min(bt, b))
    num_tiles = pl.cdiv(b, bt)

    kernel = functools.partial(
        _kld_tile_kernel, n_heads=n, bt=bt, total_b=b,
        offset1=offset1, offset2=offset2)

    # TODO(synk): for very wide C with a narrow class window, DMA only the class
    # window (aligned last-dim block or ANY-space input + manual strided copy) to
    # cut HBM traffic by C/D; for very narrow D on v7x (compute-bound), transpose
    # so batch sits on the 128-lane axis for full lane fill.  Not needed for
    # CORe50-sized class counts.
    partials = pl.pallas_call(
        kernel,
        grid=(num_tiles,),
        in_specs=[pl.BlockSpec((n, bt, c), lambda i: (0, i, 0))],
        out_specs=pl.BlockSpec((1, 1, c), lambda i: (i, 0, 0)),
        out_shape=jax.ShapeDtypeStruct((num_tiles, 1, c), jnp.float32),
        compiler_params=pltpu.CompilerParams(
            dimension_semantics=("parallel",),
            vmem_limit_bytes=min(3 * vmem_cap // 4, 128 * 1024 * 1024)),
    )(x_stack)

    # batchmean: every pair's sum is divided by the batch size B.
    return jnp.sum(partials) / jnp.float32(b)


def kld_reference(x_list, offset1, offset2):
    """Pure-JAX port of the PyTorch module for verification."""
    total = jnp.float32(0.0)
    for k in range(len(x_list)):
        for l in range(len(x_list)):
            if l != k:
                logp = jax.nn.log_softmax(
                    x_list[k][:, offset1:offset2].astype(jnp.float32), axis=1)
                q = jax.nn.softmax(
                    x_list[l][:, offset1:offset2].astype(jnp.float32), axis=1)
                total = total + jnp.sum(q * (jnp.log(q) - logp)) / q.shape[0]
    return total


if __name__ == "__main__":
    key1, key2, key3 = jax.random.split(jax.random.PRNGKey(0), 3)

    # Case 1: shapes implied by the module -- 3 heads in the list x, batch=2,
    # 16 classes, class-range slice [4, 12) (unaligned offset -> lane-mask path).
    N, B, C = 3, 2, 16
    o1, o2 = 4, 12
    x_stack = jax.random.normal(key1, (N, B, C), dtype=jnp.float32)
    loss = kld_pallas(x_stack, o1, o2)
    jax.block_until_ready(loss)
    ref = kld_reference([x_stack[i] for i in range(N)], o1, o2)
    assert jnp.allclose(loss, ref, rtol=1e-4, atol=1e-4), (loss, ref)

    # Case 2: exercise the multi-tile path (batch tiling, edge-row masking,
    # "parallel" grid, per-tile partial outputs) with a forced small batch tile.
    N2, B2, C2 = 2, 20, 32
    x2 = jax.random.normal(key2, (N2, B2, C2), dtype=jnp.float32)
    loss2 = kld_pallas(x2, 0, 32, block_b=8)
    jax.block_until_ready(loss2)
    ref2 = kld_reference([x2[i] for i in range(N2)], 0, 32)
    assert jnp.allclose(loss2, ref2, rtol=1e-4, atol=1e-4), (loss2, ref2)

    # Case 3: bf16 inputs, unaligned class window, bf16 sublane-packed tile (16),
    # padded edge tile (24 rows / bt=16 -> last tile half padded).
    N3, B3, C3 = 3, 24, 64
    x3 = jax.random.normal(key3, (N3, B3, C3), dtype=jnp.float32).astype(jnp.bfloat16)
    loss3 = kld_pallas(x3, 3, 50, block_b=16)
    jax.block_until_ready(loss3)
    ref3 = kld_reference([x3[i] for i in range(N3)], 3, 50)
    assert jnp.allclose(loss3, ref3, rtol=1e-3, atol=1e-3), (loss3, ref3)

    print("KERNEL_OK")
</pallas_src>

<mosaic_0001>
module attributes {stable_mosaic.version = 11 : i64} {
  func.func @_kld_tile_kernel(%arg0: i32, %arg1: memref<3x2x16xf32, #tpu.memory_space<vmem>>, %arg2: memref<1x1x16xf32, #tpu.memory_space<vmem>>) attributes {dimension_semantics = [#tpu.dimension_semantics<parallel>], iteration_bounds = array<i64: 1>, scalar_prefetch = 0 : i64, scratch_operands = 0 : i64, tpu.core_type = #tpu.core_type<tc>, window_params = [{transform_indices = @transform_0, window_bounds = array<i64: 3, 2, 16>}, {transform_indices = @transform_1, window_bounds = array<i64: 1, 1, 16>}]} {
    %0 = tpu.iota {dimensions = array<i32: 1>} : vector<2x16xi32>
    %c4_i32 = arith.constant 4 : i32
    %1 = vector.broadcast %c4_i32 : i32 to vector<2x16xi32>
    %2 = arith.cmpi sge, %0, %1 : vector<2x16xi32>
    %c12_i32 = arith.constant 12 : i32
    %3 = vector.broadcast %c12_i32 : i32 to vector<2x16xi32>
    %4 = arith.cmpi slt, %0, %3 : vector<2x16xi32>
    %5 = arith.andi %2, %4 : vector<2x16xi1>
    %cst = arith.constant 0.000000e+00 : f32
    %6 = vector.broadcast %cst : f32 to vector<2x16xf32>
    %cst_0 = arith.constant 0.000000e+00 : f32
    %7 = vector.broadcast %cst_0 : f32 to vector<2x16xf32>
    %cst_1 = arith.constant 0.000000e+00 : f32
    %8 = vector.broadcast %cst_1 : f32 to vector<2x16xf32>
    %c0 = arith.constant 0 : index
    %c0_2 = arith.constant 0 : index
    %c0_3 = arith.constant 0 : index
    %9 = vector.load %arg1[%c0, %c0_2, %c0_3] : memref<3x2x16xf32, #tpu.memory_space<vmem>>, vector<1x2x16xf32>
    %10 = vector.shape_cast %9 : vector<1x2x16xf32> to vector<2x16xf32>
    %cst_4 = arith.constant -1.000000e+30 : f32
    %11 = vector.broadcast %cst_4 : f32 to vector<2x16xf32>
    %12 = arith.select %5, %10, %11 : vector<2x16xi1>, vector<2x16xf32>
    %cst_5 = arith.constant dense<0xFF800000> : vector<2xf32>
    %13 = vector.multi_reduction <maximumf>, %12, %cst_5 [1] : vector<2x16xf32> to vector<2xf32>
    %14 = vector.shape_cast %13 : vector<2xf32> to vector<2x1xf32>
    %15 = vector.broadcast %14 : vector<2x1xf32> to vector<2x16xf32>
    %16 = arith.subf %12, %15 : vector<2x16xf32>
    %17 = math.exp %16 : vector<2x16xf32>
    %cst_6 = arith.constant dense<0.000000e+00> : vector<2xf32>
    %18 = vector.multi_reduction <add>, %17, %cst_6 [1] : vector<2x16xf32> to vector<2xf32>
    %19 = vector.shape_cast %18 : vector<2xf32> to vector<2x1xf32>
    %20 = math.log %19 : vector<2x1xf32>
    %21 = vector.broadcast %20 : vector<2x1xf32> to vector<2x16xf32>
    %22 = arith.subf %16, %21 : vector<2x16xf32>
    %23 = vector.broadcast %19 : vector<2x1xf32> to vector<2x16xf32>
    %24 = arith.divf %17, %23 : vector<2x16xf32>
    %25 = arith.mulf %24, %22 : vector<2x16xf32>
    %26 = arith.addf %6, %25 : vector<2x16xf32>
    %27 = arith.addf %7, %24 : vector<2x16xf32>
    %28 = arith.addf %8, %22 : vector<2x16xf32>
    %c1 = arith.constant 1 : index
    %c0_7 = arith.constant 0 : index
    %c0_8 = arith.constant 0 : index
    %29 = vector.load %arg1[%c1, %c0_7, %c0_8] : memref<3x2x16xf32, #tpu.memory_space<vmem>>, vector<1x2x16xf32>
    %30 = vector.shape_cast %29 : vector<1x2x16xf32> to vector<2x16xf32>
    %cst_9 = arith.constant -1.000000e+30 : f32
    %31 = vector.broadcast %cst_9 : f32 to vector<2x16xf32>
    %32 = arith.select %5, %30, %31 : vector<2x16xi1>, vector<2x16xf32>
    %cst_10 = arith.constant dense<0xFF800000> : vector<2xf32>
    %33 = vector.multi_reduction <maximumf>, %32, %cst_10 [1] : vector<2x16xf32> to vector<2xf32>
    %34 = vector.shape_cast %33 : vector<2xf32> to vector<2x1xf32>
    %35 = vector.broadcast %34 : vector<2x1xf32> to vector<2x16xf32>
    %36 = arith.subf %32, %35 : vector<2x16xf32>
    %37 = math.exp %36 : vector<2x16xf32>
    %cst_11 = arith.constant dense<0.000000e+00> : vector<2xf32>
    %38 = vector.multi_reduction <add>, %37, %cst_11 [1] : vector<2x16xf32> to vector<2xf32>
    %39 = vector.shape_cast %38 : vector<2xf32> to vector<2x1xf32>
    %40 = math.log %39 : vector<2x1xf32>
    %41 = vector.broadcast %40 : vector<2x1xf32> to vector<2x16xf32>
    %42 = arith.subf %36, %41 : vector<2x16xf32>
    %43 = vector.broadcast %39 : vector<2x1xf32> to vector<2x16xf32>
    %44 = arith.divf %37, %43 : vector<2x16xf32>
    %45 = arith.mulf %44, %42 : vector<2x16xf32>
    %46 = arith.addf %26, %45 : vector<2x16xf32>
    %47 = arith.addf %27, %44 : vector<2x16xf32>
    %48 = arith.addf %28, %42 : vector<2x16xf32>
    %c2 = arith.constant 2 : index
    %c0_12 = arith.constant 0 : index
    %c0_13 = arith.constant 0 : index
    %49 = vector.load %arg1[%c2, %c0_12, %c0_13] : memref<3x2x16xf32, #tpu.memory_space<vmem>>, vector<1x2x16xf32>
    %50 = vector.shape_cast %49 : vector<1x2x16xf32> to vector<2x16xf32>
    %cst_14 = arith.constant -1.000000e+30 : f32
    %51 = vector.broadcast %cst_14 : f32 to vector<2x16xf32>
    %52 = arith.select %5, %50, %51 : vector<2x16xi1>, vector<2x16xf32>
    %cst_15 = arith.constant dense<0xFF800000> : vector<2xf32>
    %53 = vector.multi_reduction <maximumf>, %52, %cst_15 [1] : vector<2x16xf32> to vector<2xf32>
    %54 = vector.shape_cast %53 : vector<2xf32> to vector<2x1xf32>
    %55 = vector.broadcast %54 : vector<2x1xf32> to vector<2x16xf32>
    %56 = arith.subf %52, %55 : vector<2x16xf32>
    %57 = math.exp %56 : vector<2x16xf32>
    %cst_16 = arith.constant dense<0.000000e+00> : vector<2xf32>
    %58 = vector.multi_reduction <add>, %57, %cst_16 [1] : vector<2x16xf32> to vector<2xf32>
    %59 = vector.shape_cast %58 : vector<2xf32> to vector<2x1xf32>
    %60 = math.log %59 : vector<2x1xf32>
    %61 = vector.broadcast %60 : vector<2x1xf32> to vector<2x16xf32>
    %62 = arith.subf %56, %61 : vector<2x16xf32>
    %63 = vector.broadcast %59 : vector<2x1xf32> to vector<2x16xf32>
    %64 = arith.divf %57, %63 : vector<2x16xf32>
    %65 = arith.mulf %64, %62 : vector<2x16xf32>
    %66 = arith.addf %46, %65 : vector<2x16xf32>
    %67 = arith.addf %47, %64 : vector<2x16xf32>
    %68 = arith.addf %48, %62 : vector<2x16xf32>
    %cst_17 = arith.constant 3.000000e+00 : f32
    %69 = vector.broadcast %cst_17 : f32 to vector<2x16xf32>
    %70 = arith.mulf %69, %66 : vector<2x16xf32>
    %71 = arith.mulf %67, %68 : vector<2x16xf32>
    %72 = arith.subf %70, %71 : vector<2x16xf32>
    %c2_i32 = arith.constant 2 : i32
    %73 = arith.muli %arg0, %c2_i32 : i32
    %74 = tpu.iota {dimensions = array<i32: 0>} : vector<2x1xi32>
    %75 = vector.broadcast %73 : i32 to vector<2x1xi32>
    %76 = arith.addi %74, %75 : vector<2x1xi32>
    %c2_i32_18 = arith.constant 2 : i32
    %77 = vector.broadcast %c2_i32_18 : i32 to vector<2x1xi32>
    %78 = arith.cmpi slt, %76, %77 : vector<2x1xi32>
    %79 = vector.broadcast %78 : vector<2x1xi1> to vector<2x16xi1>
    %80 = arith.andi %79, %5 : vector<2x16xi1>
    %cst_19 = arith.constant 0.000000e+00 : f32
    %81 = vector.broadcast %cst_19 : f32 to vector<2x16xf32>
    %82 = arith.select %80, %72, %81 : vector<2x16xi1>, vector<2x16xf32>
    %cst_20 = arith.constant dense<0.000000e+00> : vector<16xf32>
    %83 = vector.multi_reduction <add>, %82, %cst_20 [0] : vector<2x16xf32> to vector<16xf32>
    %84 = vector.shape_cast %83 : vector<16xf32> to vector<1x16xf32>
    %85 = vector.shape_cast %84 : vector<1x16xf32> to vector<1x1x16xf32>
    %c0_21 = arith.constant 0 : index
    %c0_22 = arith.constant 0 : index
    %c0_23 = arith.constant 0 : index
    %86 = vector.load %arg2[%c0_21, %c0_22, %c0_23] : memref<1x1x16xf32, #tpu.memory_space<vmem>>, vector<1x1x16xf32>
    tpu.vector_store %arg2[%c0_21, %c0_22, %c0_23], %85 {strides = array<i32>} : memref<1x1x16xf32, #tpu.memory_space<vmem>>, vector<1x1x16xf32>,
    return
  }
  func.func @transform_0(%arg0: i32) -> (i32, i32, i32) {
    %c0_i32 = arith.constant 0 : i32
    %c0_i32_0 = arith.constant 0 : i32
    %c0_i32_1 = arith.constant 0 : i32
    return %c0_i32, %arg0, %c0_i32_0 : i32, i32, i32
  }
  func.func @transform_1(%arg0: i32) -> (i32, i32, i32) {
    %c0_i32 = arith.constant 0 : i32
    %c0_i32_0 = arith.constant 0 : i32
    %c0_i32_1 = arith.constant 0 : i32
    return %arg0, %c0_i32, %c0_i32_0 : i32, i32, i32
  }
}

</mosaic_0001>

<llo_original>
// kernel: tpu_custom_call.1
$region0: #{tpu_custom_call.1}
  #allocation0 [shape = 'u32[]', space=smem, size = 0x4, offset = 0x4, fixed_abs, tag = 'smem constant byte address 0x4 - core index']
  #allocation1 [shape = 'u32[72,128]{1,0:T(1,128)}', space=vmem, size = 0x9000, scoped, tag = 'internal scratch']
  %s0 = inlined_call_operand.hbm [shape: f32[3,2,16], index: 0, kind: input, shape index: {}]
  %s1 = inlined_call_operand.hbm [shape: f32[1,1,16], index: 1, kind: output, shape index: {}]
  %s2 = sld [smem:[#allocation0]]
  $region18: #{tpu_custom_call.1} parent=0
    _
  %s4 = ssub.s32 1, %s2
  %s5 = scalar_select 0, %s4, %s2
  $region1: #{tpu_custom_call.1} parent=0
    #allocation2 [shape = 'u8[3072]{0}', space=vmem, size = 0xc00, scoped, tag = 'input window, operand 0, single buffered']
    #allocation3 [shape = 's32[1]{0}', space=sflag, size = 0x4, scoped, tag = 'scoped memory for tpu_custom_call.1']
    #allocation4 [shape = 's32[1]{0}', space=sflag, size = 0x4, scoped, tag = 'scoped memory for tpu_custom_call.1']
    #allocation5 [shape = 'u8[512]{0}', space=vmem, size = 0x400, scoped, tag = 'output window, operand 0, single buffered']
    %6 = vsyncpa [#allocation3], 0
    %7 = vsyncpa [#allocation4], 0
    // Predicated region
    $region2: #{tpu_custom_call.1} parent=1 // pred_check
      _
    $region3: #{tpu_custom_call.1} parent=1 // pred_check_branch
      %9 = sbr.rel (0) target = $region5
    $region4: #{tpu_custom_call.1} parent=1 // pred_region
      %11 = vsyncadd [#allocation3], 0
      %s12 = sshll.u32 %s0, 4
      %s13 = int_to_ptr.hbm [resolvable:$true] %s12
      %s14 = sshll.u32 [#allocation2], 4
      %s15 = int_to_ptr.vmem [resolvable:$true] %s14
      %20 = dma.hbm_to_vmem [thread:$0]  %s13, 96, %s15, [#allocation3], 32, 32, 2
    $region5: #{tpu_custom_call.1} parent=1 // pred_fallthru
      _
    // Predicated region
    $region6: #{tpu_custom_call.1} parent=1 // pred_check
      _
    $region7: #{tpu_custom_call.1} parent=1 // pred_check_branch
      %22 = sbr.rel (0) target = $region9
    $region8: #{tpu_custom_call.1} parent=1 // pred_region
      %24 = dma.done [#allocation3], 96
    $region9: #{tpu_custom_call.1} parent=1 // pred_fallthru
      _
    %v25 = vlaneseq
    %v26 = vand.u32 %v25, 127
    %vm27 = vcmp.ge.s32.totalorder %v26, 4
    %vm28 = vcmp.lt.s32.totalorder %v26, 12
    %vm29 = vmand %vm27, %vm28
    %v30 = vld [vmem:[#allocation2] sm:$0x3]
    %v31 = vsel %vm29, %v30, -1e+30
    %vm32 = vcmask 123904
    %v33 = vsel %vm32, %v31, -inf
    %34 = vmax.xlane.f32.xlu0 %v33
    %v35 = vpop.xlane.xlu0 %34
    %v36 = vsub.f32 %v31, %v35
    %v37 = vmul.f32 %v36, 1.442695
    %v38 = vpow.pop %v37
    %v39 = vsel %vm32, %v38, 0.0
    %40 = vadd.xlane.f32.xlu0 %v39
    %v41 = vpop.xlane.xlu0 %40
    %v42 = vlog2.pop %v41
    %v43 = vmul.f32 %v42, 0.6931472
    %v44 = vsub.f32 %v36, %v43
    %v45 = vrcp.pop %v41
    %v46 = vmul.f32 %v41, %v45
    %v47 = vsub.f32 1.0, %v46
    %v48 = vmul.f32 %v45, %v47
    %v49 = vadd.f32 %v45, %v48
    %vm50 = vweird.f32 %v41
    %vm51 = vweird.f32 %v45
    %vm52 = vmor %vm50, %vm51
    %v53 = vsel %vm52, %v45, %v49
    %v54 = vand.u32 2147483647, %v41
    %vm55 = vcmp.eq.f32.partialorder %v54, 8.507059e+37
    %v56 = vand.u32 %v41, 2147483648
    %v57 = vor.u32 1.1754944e-38, %v56
    %v58 = vsel %vm55, %v57, %v53
    %v59 = vmul.f32 %v38, %v58
    %v60 = vmul.f32 %v59, %v44
    %v61 = vadd.f32 %v60, 0.0
    %v62 = vadd.f32 %v59, 0.0
    %v63 = vadd.f32 %v44, 0.0
    %s64 = scalar_lea.vmem [#allocation2], 2
    %v65 = vld [vmem:[%s64] sm:$0x3]
    %v66 = vsel %vm29, %v65, -1e+30
    %v67 = vsel %vm32, %v66, -inf
    %68 = vmax.xlane.f32.xlu0 %v67
    %v69 = vpop.xlane.xlu0 %68
    %v70 = vsub.f32 %v66, %v69
    %v71 = vmul.f32 %v70, 1.442695
    %v72 = vpow.pop %v71
    %v73 = vsel %vm32, %v72, 0.0
    %74 = vadd.xlane.f32.xlu0 %v73
    %v75 = vpop.xlane.xlu0 %74
    %v76 = vlog2.pop %v75
    %v77 = vmul.f32 %v76, 0.6931472
    %v78 = vsub.f32 %v70, %v77
    %v79 = vrcp.pop %v75
    %v80 = vmul.f32 %v75, %v79
    %v81 = vsub.f32 1.0, %v80
    %v82 = vmul.f32 %v79, %v81
    %v83 = vadd.f32 %v79, %v82
    %vm84 = vweird.f32 %v75
    %vm85 = vweird.f32 %v79
    %vm86 = vmor %vm84, %vm85
    %v87 = vsel %vm86, %v79, %v83
    %v88 = vand.u32 2147483647, %v75
    %vm89 = vcmp.eq.f32.partialorder %v88, 8.507059e+37
    %v90 = vand.u32 %v75, 2147483648
    %v91 = vor.u32 1.1754944e-38, %v90
    %v92 = vsel %vm89, %v91, %v87
    %v93 = vmul.f32 %v72, %v92
    %v94 = vmul.f32 %v93, %v78
    %v95 = vadd.f32 %v61, %v94
    %v96 = vadd.f32 %v62, %v93
    %v97 = vadd.f32 %v63, %v78
    %s98 = scalar_lea.vmem [#allocation2], 4
    %v99 = vld [vmem:[%s98] sm:$0x3]
    %v100 = vsel %vm29, %v99, -1e+30
    %v101 = vsel %vm32, %v100, -inf
    %102 = vmax.xlane.f32.xlu0 %v101
    %v103 = vpop.xlane.xlu0 %102
    %v104 = vsub.f32 %v100, %v103
    %v105 = vmul.f32 %v104, 1.442695
    %v106 = vpow.pop %v105
    %v107 = vsel %vm32, %v106, 0.0
    %108 = vadd.xlane.f32.xlu0 %v107
    %v109 = vpop.xlane.xlu0 %108
    %v110 = vlog2.pop %v109
    %v111 = vmul.f32 %v110, 0.6931472
    %v112 = vsub.f32 %v104, %v111
    %v113 = vrcp.pop %v109
    %v114 = vmul.f32 %v109, %v113
    %v115 = vsub.f32 1.0, %v114
    %v116 = vmul.f32 %v113, %v115
    %v117 = vadd.f32 %v113, %v116
    %vm118 = vweird.f32 %v109
    %vm119 = vweird.f32 %v113
    %vm120 = vmor %vm118, %vm119
    %v121 = vsel %vm120, %v113, %v117
    %v122 = vand.u32 2147483647, %v109
    %vm123 = vcmp.eq.f32.partialorder %v122, 8.507059e+37
    %v124 = vand.u32 %v109, 2147483648
    %v125 = vor.u32 1.1754944e-38, %v124
    %v126 = vsel %vm123, %v125, %v121
    %v127 = vmul.f32 %v106, %v126
    %v128 = vmul.f32 %v127, %v112
    %v129 = vadd.f32 %v95, %v128
    %v130 = vadd.f32 %v96, %v127
    %v131 = vadd.f32 %v97, %v112
    %v132 = vmul.f32 %v129, 3.0
    %v133 = vmul.f32 %v130, %v131
    %v134 = vsub.f32 %v132, %v133
    %s135 = smul.u32 0, 2
    %v136 = vlaneseq
    %v137 = vshrl.u32 %v136, 7
    %v138 = vstv %s135
    %v139 = vadd.s32 %v137, %v138
    %vm140 = vcmp.lt.s32.totalorder %v139, 2
    %v141 = vsel %vm140, 1, 0
    %vm142 = vcmp.eq.s32.totalorder %v141, 1
    %vm143 = vmand %vm142, %vm29
    %v144 = vsel %vm143, %v134, 0.0
    %v145 = vsel %vm32, %v144, 0.0
    %v146 = vrot.slane %v145, 4
    %v147 = vadd.f32 %v145, %v146
    %v148 = vrot.slane %v147, 2
    %v149 = vadd.f32 %v147, %v148
    %v150 = vrot.slane %v149, 1
    %v151 = vadd.f32 %v149, %v150
    %vm152 = vcmask 122880
    %153 = vst.msk [vmem:[#allocation5] sm:$0x1] %vm152, %v151
    // Predicated region
    $region10: #{tpu_custom_call.1} parent=1 // pred_check
      _
    $region11: #{tpu_custom_call.1} parent=1 // pred_check_branch
      %155 = sbr.rel (0) target = $region13
    $region12: #{tpu_custom_call.1} parent=1 // pred_region
      %157 = vsyncadd [#allocation4], 0
      %s159 = sshll.u32 [#allocation5], 4
      %s160 = int_to_ptr.vmem [resolvable:$true] %s159
      %s161 = sshll.u32 %s1, 4
      %s162 = int_to_ptr.hbm [resolvable:$true] %s161
      %164 = dma.vmem_to_hbm [thread:$0]  %s160, 16, %s162, [#allocation4]
    $region13: #{tpu_custom_call.1} parent=1 // pred_fallthru
      _
    // Predicated region
    $region14: #{tpu_custom_call.1} parent=1 // pred_check
      _
    $region15: #{tpu_custom_call.1} parent=1 // pred_check_branch
      %166 = sbr.rel (0) target = $region17
    $region16: #{tpu_custom_call.1} parent=1 // pred_region
      %168 = dma.done [#allocation4], 16
    $region17: #{tpu_custom_call.1} parent=1 // pred_fallthru
      _
    %169 = vsyncpa [#allocation3], 1
    %170 = vsyncpa [#allocation4], 1

</llo_original>
